<compile_context>
chip_gen: v6e
topology: v6e:2x2x1
jax: 0.10.0
libtpu: 0.0.40
codegen_flags: <defaults>
</compile_context>

<pallas_src>
import functools

import jax
import jax.numpy as jnp
from jax import lax
from jax.experimental import pallas as pl
from jax.experimental.pallas import tpu as pltpu


def _round_up(x, m):
    return (x + m - 1) // m * m


def _vmem_capacity_bytes():
    try:
        return int(pltpu.get_tpu_info().vmem_capacity_bytes)
    except Exception:
        return 64 * 1024 * 1024  # conservative fallback (v7x physical VMEM)


def _resident_kernel(x_ref, w_ref, b_ref, o_ref, *, num_layers, unroll):
    """All layers applied in one grid step; weights fully resident in VMEM.

    x_ref: [tb, F] f32   w_ref: [L, F, 2F] param dtype   b_ref: [L, 2, F] f32
    o_ref: [tb, F] f32
    """
    feat = x_ref.shape[1]

    def layer_body(l, state):
        w = w_ref[l]                                  # [F, 2F]  (w1 | w2)
        b = b_ref[l]                                  # [2, F]   f32
        h = jnp.dot(state.astype(w.dtype), w[:, :feat],
                    preferred_element_type=jnp.float32) + b[0:1]
        h = jnp.maximum(h, 0.0)
        y = jnp.dot(h.astype(w.dtype), w[:, feat:],
                    preferred_element_type=jnp.float32) + b[1:2]
        return jnp.maximum(y + state, 0.0)

    o_ref[...] = lax.fori_loop(0, num_layers, layer_body, x_ref[...],
                               unroll=unroll)


def _stream_kernel(x_ref, w_ref, b_ref, o_ref):
    """One grid step = one ResLayer applied to the VMEM-resident state.

    Correctness requires the layer axis to be the LAST (innermost) grid axis,
    marked "arbitrary", with a constant output block index across it so the
    residual state in o_ref is never written back between layers.
    """
    feat = x_ref.shape[1]
    layer = pl.program_id(1)

    @pl.when(layer == 0)
    def _():
        o_ref[...] = x_ref[...]

    state = o_ref[...]                                 # f32 residual state
    w = w_ref[0]                                       # [F, 2F] (w1 | w2)
    b = b_ref[layer]                                   # [2, F]  f32 (resident)

    h = jnp.dot(state.astype(w.dtype), w[:, :feat],
                preferred_element_type=jnp.float32) + b[0:1]
    h = jnp.maximum(h, 0.0)
    y = jnp.dot(h.astype(w.dtype), w[:, feat:],
                preferred_element_type=jnp.float32) + b[1:2]
    o_ref[...] = jnp.maximum(y + state, 0.0)


def deep_resnet(x, w1, b1, w2, b2, *, tile_b=None,
                param_dtype=jnp.bfloat16, force_stream=False):
    """DeepResNet forward: L sequential ResLayers.

    x       : [B, F]
    w1, w2  : [L, F, F]   pre-transposed ([in, out] layout; out = in @ W)
    b1, b2  : [L, F] or [L, 1, F]
    param_dtype : dtype of the matmul operands (accumulate/residual stay f32)
    """
    B, F = x.shape
    L = w1.shape[0]
    assert w1.shape == (L, F, F) and w2.shape == (L, F, F)

    x = x.astype(jnp.float32)
    w1 = w1.astype(param_dtype)
    w2 = w2.astype(param_dtype)
    b1 = b1.reshape(L, 1, F).astype(jnp.float32)
    b2 = b2.reshape(L, 1, F).astype(jnp.float32)

    # Keep the lane (feature) dim a multiple of 128 -> unmasked lane-dense
    # stores. Zero padding is exact: padded columns stay 0 through every layer.
    Fp = _round_up(F, 128)
    if Fp != F:
        pad = Fp - F
        x = jnp.pad(x, ((0, 0), (0, pad)))
        w1 = jnp.pad(w1, ((0, 0), (0, pad), (0, pad)))
        w2 = jnp.pad(w2, ((0, 0), (0, pad), (0, pad)))
        b1 = jnp.pad(b1, ((0, 0), (0, 0), (0, pad)))
        b2 = jnp.pad(b2, ((0, 0), (0, 0), (0, pad)))

    # Pack the two per-layer linears into one weight block and one bias block.
    w = jnp.concatenate([w1, w2], axis=2)              # [L, Fp, 2*Fp]
    b = jnp.concatenate([b1, b2], axis=1)              # [L, 2,  Fp]

    param_bytes = jnp.dtype(param_dtype).itemsize
    w_bytes = L * Fp * 2 * Fp * param_bytes
    b_bytes = L * 2 * Fp * 4
    cap = _vmem_capacity_bytes()
    budget = int(0.75 * cap)

    # Weights-resident fast path: weights DMA'd exactly once per launch.
    # (Budget conservatively assumes the pipeline double-buffers the
    # index-invariant blocks; 8 MiB reserved for x/out tiles + slack.)
    resident = (not force_stream) and (2 * (w_bytes + b_bytes) <= budget - (8 << 20))

    if resident:
        fixed_vmem = 2 * (w_bytes + b_bytes)
    else:
        # double-buffered streamed per-layer weight block + resident biases
        fixed_vmem = 2 * (Fp * 2 * Fp * param_bytes) + 2 * b_bytes

    if tile_b is None:
        # Roofline-sized batch tile (arithmetic intensity on streamed weight
        # bytes ~ tile_b FLOPs/byte for bf16), capped by the VMEM budget.
        # No forced tile-halving: single-TC parts (v5e/v6e) want one big tile.
        io_bytes_per_row = 2 * 2 * Fp * 4              # x + out, dbl-buffered f32
        rows_fit = max(8, (budget - fixed_vmem) // max(io_bytes_per_row, 1))
        tile_b = min(512, _round_up(B, 8), rows_fit)
        tile_b = max(8, (tile_b // 8) * 8)
    assert tile_b % 8 == 0, "tile_b must be a multiple of 8 (sublane)"

    # Pad batch to a whole number of tiles (rows are independent).
    Bp = _round_up(B, tile_b)
    if Bp != B:
        x = jnp.pad(x, ((0, Bp - B), (0, 0)))
    n_btiles = Bp // tile_b

    vmem_limit = int(min(int(0.92 * cap),
                         max(32 << 20,
                             fixed_vmem + 2 * 2 * tile_b * Fp * 4 + (4 << 20))))

    if resident:
        kernel = functools.partial(_resident_kernel, num_layers=L,
                                   unroll=(L <= 8))
        out = pl.pallas_call(
            kernel,
            out_shape=jax.ShapeDtypeStruct((Bp, Fp), jnp.float32),
            grid=(n_btiles,),
            in_specs=[
                pl.BlockSpec((tile_b, Fp), lambda i: (i, 0)),         # x tile
                pl.BlockSpec((L, Fp, 2 * Fp), lambda i: (0, 0, 0)),   # all weights
                pl.BlockSpec((L, 2, Fp), lambda i: (0, 0, 0)),        # all biases
            ],
            out_specs=pl.BlockSpec((tile_b, Fp), lambda i: (i, 0)),
            compiler_params=pltpu.CompilerParams(
                dimension_semantics=("parallel",),
                vmem_limit_bytes=vmem_limit),
        )(x, w, b)
    else:
        # Streaming path: layer axis MUST stay innermost & "arbitrary" with a
        # constant output block index (residual state resident in VMEM).
        # TODO(synk): add a K/N-tiling grid axis with an f32 accumulator when
        # even one [F, 2F] weight block exceeds the VMEM budget (large F on v7x).
        out = pl.pallas_call(
            _stream_kernel,
            out_shape=jax.ShapeDtypeStruct((Bp, Fp), jnp.float32),
            grid=(n_btiles, L),
            in_specs=[
                pl.BlockSpec((tile_b, Fp), lambda i, l: (i, 0)),        # x tile
                pl.BlockSpec((1, Fp, 2 * Fp), lambda i, l: (l, 0, 0)),  # layer wts
                pl.BlockSpec((L, 2, Fp), lambda i, l: (0, 0, 0)),       # biases
            ],
            out_specs=pl.BlockSpec((tile_b, Fp), lambda i, l: (i, 0)),
            compiler_params=pltpu.CompilerParams(
                dimension_semantics=("parallel", "arbitrary"),
                vmem_limit_bytes=vmem_limit),
        )(x, w, b)

    return out[:B, :F]


def _reference(x, w1, b1, w2, b2):
    """Pure-JAX reference (full f32 matmuls)."""
    out = x
    for l in range(w1.shape[0]):
        h = jnp.maximum(
            jnp.dot(out, w1[l], precision=lax.Precision.HIGHEST)
            + b1[l].reshape(1, -1), 0.0)
        y = jnp.dot(h, w2[l], precision=lax.Precision.HIGHEST) + b2[l].reshape(1, -1)
        out = jnp.maximum(y + out, 0.0)
    return out


if __name__ == "__main__":
    # Small, module-consistent shapes: batch=16, features=128, num_layers=3.
    B, F, L = 16, 128, 3

    key = jax.random.PRNGKey(0)
    kx, kw1, kb1, kw2, kb2 = jax.random.split(key, 5)

    x = jax.random.normal(kx, (B, F), dtype=jnp.float32)

    # PyTorch nn.Linear default init bounds; weights stored pre-transposed [in, out].
    bound = 1.0 / jnp.sqrt(F)
    w1 = jax.random.uniform(kw1, (L, F, F), jnp.float32, -bound, bound)
    b1 = jax.random.uniform(kb1, (L, F), jnp.float32, -bound, bound)
    w2 = jax.random.uniform(kw2, (L, F, F), jnp.float32, -bound, bound)
    b2 = jax.random.uniform(kb2, (L, F), jnp.float32, -bound, bound)

    ref = _reference(x, w1, b1, w2, b2)

    # Weights-resident fast path (default for small weight stacks), f32 operands.
    out_res = deep_resnet(x, w1, b1, w2, b2, param_dtype=jnp.float32)
    jax.block_until_ready(out_res)
    assert out_res.shape == (B, F)
    assert jnp.allclose(out_res, ref, atol=1e-3, rtol=1e-3), "resident f32 mismatch"

    # Streaming fallback path (per-layer weight DMA), f32 operands.
    out_stream = deep_resnet(x, w1, b1, w2, b2, param_dtype=jnp.float32,
                             force_stream=True)
    jax.block_until_ready(out_stream)
    assert jnp.allclose(out_stream, ref, atol=1e-3, rtol=1e-3), "stream f32 mismatch"

    # Default bf16 operand path (f32 accumulate/residual), looser tolerance.
    out_bf16 = deep_resnet(x, w1, b1, w2, b2)
    jax.block_until_ready(out_bf16)
    assert jnp.allclose(out_bf16, ref, atol=1e-1, rtol=1e-1), "bf16 mismatch"

    print("KERNEL_OK")
</pallas_src>

<mosaic_0001>
module attributes {stable_mosaic.version = 11 : i64} {
  func.func @_resident_kernel(%arg0: i32, %arg1: memref<16x128xf32, #tpu.memory_space<vmem>>, %arg2: memref<3x128x256xf32, #tpu.memory_space<vmem>>, %arg3: memref<3x2x128xf32, #tpu.memory_space<vmem>>, %arg4: memref<16x128xf32, #tpu.memory_space<vmem>>) attributes {dimension_semantics = [#tpu.dimension_semantics<parallel>], iteration_bounds = array<i64: 1>, scalar_prefetch = 0 : i64, scratch_operands = 0 : i64, tpu.core_type = #tpu.core_type<tc>, window_params = [{transform_indices = @transform_0, window_bounds = array<i64: 16, 128>}, {pipeline_mode = #tpu.pipeline_mode<synchronous>, transform_indices = @transform_1, window_bounds = array<i64: 3, 128, 256>}, {pipeline_mode = #tpu.pipeline_mode<synchronous>, transform_indices = @transform_2, window_bounds = array<i64: 3, 2, 128>}, {transform_indices = @transform_3, window_bounds = array<i64: 16, 128>}]} {
    %c0 = arith.constant 0 : index
    %c0_0 = arith.constant 0 : index
    %0 = vector.load %arg1[%c0, %c0_0] : memref<16x128xf32, #tpu.memory_space<vmem>>, vector<16x128xf32>
    %c0_i32 = arith.constant 0 : i32
    %1 = arith.index_cast %c0_i32 : i32 to index
    %c0_1 = arith.constant 0 : index
    %c0_2 = arith.constant 0 : index
    %2 = vector.load %arg2[%1, %c0_1, %c0_2] : memref<3x128x256xf32, #tpu.memory_space<vmem>>, vector<1x128x256xf32>
    %3 = vector.shape_cast %2 : vector<1x128x256xf32> to vector<128x256xf32>
    %4 = arith.index_cast %c0_i32 : i32 to index
    %c0_3 = arith.constant 0 : index
    %c0_4 = arith.constant 0 : index
    %5 = vector.load %arg3[%4, %c0_3, %c0_4] : memref<3x2x128xf32, #tpu.memory_space<vmem>>, vector<1x2x128xf32>
    %6 = vector.shape_cast %5 : vector<1x2x128xf32> to vector<2x128xf32>
    %7 = vector.extract_strided_slice %3 {offsets = [0, 0], sizes = [128, 128], strides = [1, 1]} : vector<128x256xf32> to vector<128x128xf32>
    %cst = arith.constant dense<0.000000e+00> : vector<16x128xf32>
    %8 = tpu.matmul %0, %7, %cst {dimension_numbers = #tpu.dot_dimension_numbers<[1], [0], [0], [1], [0, 0, 1, 1], [], []>} : vector<16x128xf32>, vector<128x128xf32>, vector<16x128xf32> -> vector<16x128xf32>
    %9 = vector.extract_strided_slice %6 {offsets = [0, 0], sizes = [1, 128], strides = [1, 1]} : vector<2x128xf32> to vector<1x128xf32>
    %10 = vector.broadcast %9 : vector<1x128xf32> to vector<16x128xf32>
    %11 = arith.addf %8, %10 : vector<16x128xf32>
    %cst_5 = arith.constant 0.000000e+00 : f32
    %12 = vector.broadcast %cst_5 : f32 to vector<16x128xf32>
    %13 = arith.maximumf %11, %12 : vector<16x128xf32>
    %14 = vector.extract_strided_slice %3 {offsets = [0, 128], sizes = [128, 128], strides = [1, 1]} : vector<128x256xf32> to vector<128x128xf32>
    %cst_6 = arith.constant dense<0.000000e+00> : vector<16x128xf32>
    %15 = tpu.matmul %13, %14, %cst_6 {dimension_numbers = #tpu.dot_dimension_numbers<[1], [0], [0], [1], [0, 0, 1, 1], [], []>} : vector<16x128xf32>, vector<128x128xf32>, vector<16x128xf32> -> vector<16x128xf32>
    %16 = vector.extract_strided_slice %6 {offsets = [1, 0], sizes = [1, 128], strides = [1, 1]} : vector<2x128xf32> to vector<1x128xf32>
    %17 = vector.broadcast %16 : vector<1x128xf32> to vector<16x128xf32>
    %18 = arith.addf %15, %17 : vector<16x128xf32>
    %19 = arith.addf %18, %0 : vector<16x128xf32>
    %cst_7 = arith.constant 0.000000e+00 : f32
    %20 = vector.broadcast %cst_7 : f32 to vector<16x128xf32>
    %21 = arith.maximumf %19, %20 : vector<16x128xf32>
    %c1_i32 = arith.constant 1 : i32
    %22 = arith.index_cast %c1_i32 : i32 to index
    %c0_8 = arith.constant 0 : index
    %c0_9 = arith.constant 0 : index
    %23 = vector.load %arg2[%22, %c0_8, %c0_9] : memref<3x128x256xf32, #tpu.memory_space<vmem>>, vector<1x128x256xf32>
    %24 = vector.shape_cast %23 : vector<1x128x256xf32> to vector<128x256xf32>
    %25 = arith.index_cast %c1_i32 : i32 to index
    %c0_10 = arith.constant 0 : index
    %c0_11 = arith.constant 0 : index
    %26 = vector.load %arg3[%25, %c0_10, %c0_11] : memref<3x2x128xf32, #tpu.memory_space<vmem>>, vector<1x2x128xf32>
    %27 = vector.shape_cast %26 : vector<1x2x128xf32> to vector<2x128xf32>
    %28 = vector.extract_strided_slice %24 {offsets = [0, 0], sizes = [128, 128], strides = [1, 1]} : vector<128x256xf32> to vector<128x128xf32>
    %cst_12 = arith.constant dense<0.000000e+00> : vector<16x128xf32>
    %29 = tpu.matmul %21, %28, %cst_12 {dimension_numbers = #tpu.dot_dimension_numbers<[1], [0], [0], [1], [0, 0, 1, 1], [], []>} : vector<16x128xf32>, vector<128x128xf32>, vector<16x128xf32> -> vector<16x128xf32>
    %30 = vector.extract_strided_slice %27 {offsets = [0, 0], sizes = [1, 128], strides = [1, 1]} : vector<2x128xf32> to vector<1x128xf32>
    %31 = vector.broadcast %30 : vector<1x128xf32> to vector<16x128xf32>
    %32 = arith.addf %29, %31 : vector<16x128xf32>
    %cst_13 = arith.constant 0.000000e+00 : f32
    %33 = vector.broadcast %cst_13 : f32 to vector<16x128xf32>
    %34 = arith.maximumf %32, %33 : vector<16x128xf32>
    %35 = vector.extract_strided_slice %24 {offsets = [0, 128], sizes = [128, 128], strides = [1, 1]} : vector<128x256xf32> to vector<128x128xf32>
    %cst_14 = arith.constant dense<0.000000e+00> : vector<16x128xf32>
    %36 = tpu.matmul %34, %35, %cst_14 {dimension_numbers = #tpu.dot_dimension_numbers<[1], [0], [0], [1], [0, 0, 1, 1], [], []>} : vector<16x128xf32>, vector<128x128xf32>, vector<16x128xf32> -> vector<16x128xf32>
    %37 = vector.extract_strided_slice %27 {offsets = [1, 0], sizes = [1, 128], strides = [1, 1]} : vector<2x128xf32> to vector<1x128xf32>
    %38 = vector.broadcast %37 : vector<1x128xf32> to vector<16x128xf32>
    %39 = arith.addf %36, %38 : vector<16x128xf32>
    %40 = arith.addf %39, %21 : vector<16x128xf32>
    %cst_15 = arith.constant 0.000000e+00 : f32
    %41 = vector.broadcast %cst_15 : f32 to vector<16x128xf32>
    %42 = arith.maximumf %40, %41 : vector<16x128xf32>
    %c2_i32 = arith.constant 2 : i32
    %43 = arith.index_cast %c2_i32 : i32 to index
    %c0_16 = arith.constant 0 : index
    %c0_17 = arith.constant 0 : index
    %44 = vector.load %arg2[%43, %c0_16, %c0_17] : memref<3x128x256xf32, #tpu.memory_space<vmem>>, vector<1x128x256xf32>
    %45 = vector.shape_cast %44 : vector<1x128x256xf32> to vector<128x256xf32>
    %46 = arith.index_cast %c2_i32 : i32 to index
    %c0_18 = arith.constant 0 : index
    %c0_19 = arith.constant 0 : index
    %47 = vector.load %arg3[%46, %c0_18, %c0_19] : memref<3x2x128xf32, #tpu.memory_space<vmem>>, vector<1x2x128xf32>
    %48 = vector.shape_cast %47 : vector<1x2x128xf32> to vector<2x128xf32>
    %49 = vector.extract_strided_slice %45 {offsets = [0, 0], sizes = [128, 128], strides = [1, 1]} : vector<128x256xf32> to vector<128x128xf32>
    %cst_20 = arith.constant dense<0.000000e+00> : vector<16x128xf32>
    %50 = tpu.matmul %42, %49, %cst_20 {dimension_numbers = #tpu.dot_dimension_numbers<[1], [0], [0], [1], [0, 0, 1, 1], [], []>} : vector<16x128xf32>, vector<128x128xf32>, vector<16x128xf32> -> vector<16x128xf32>
    %51 = vector.extract_strided_slice %48 {offsets = [0, 0], sizes = [1, 128], strides = [1, 1]} : vector<2x128xf32> to vector<1x128xf32>
    %52 = vector.broadcast %51 : vector<1x128xf32> to vector<16x128xf32>
    %53 = arith.addf %50, %52 : vector<16x128xf32>
    %cst_21 = arith.constant 0.000000e+00 : f32
    %54 = vector.broadcast %cst_21 : f32 to vector<16x128xf32>
    %55 = arith.maximumf %53, %54 : vector<16x128xf32>
    %56 = vector.extract_strided_slice %45 {offsets = [0, 128], sizes = [128, 128], strides = [1, 1]} : vector<128x256xf32> to vector<128x128xf32>
    %cst_22 = arith.constant dense<0.000000e+00> : vector<16x128xf32>
    %57 = tpu.matmul %55, %56, %cst_22 {dimension_numbers = #tpu.dot_dimension_numbers<[1], [0], [0], [1], [0, 0, 1, 1], [], []>} : vector<16x128xf32>, vector<128x128xf32>, vector<16x128xf32> -> vector<16x128xf32>
    %58 = vector.extract_strided_slice %48 {offsets = [1, 0], sizes = [1, 128], strides = [1, 1]} : vector<2x128xf32> to vector<1x128xf32>
    %59 = vector.broadcast %58 : vector<1x128xf32> to vector<16x128xf32>
    %60 = arith.addf %57, %59 : vector<16x128xf32>
    %61 = arith.addf %60, %42 : vector<16x128xf32>
    %cst_23 = arith.constant 0.000000e+00 : f32
    %62 = vector.broadcast %cst_23 : f32 to vector<16x128xf32>
    %63 = arith.maximumf %61, %62 : vector<16x128xf32>
    %c3_i32 = arith.constant 3 : i32
    %c0_24 = arith.constant 0 : index
    %c0_25 = arith.constant 0 : index
    %64 = vector.load %arg4[%c0_24, %c0_25] : memref<16x128xf32, #tpu.memory_space<vmem>>, vector<16x128xf32>
    tpu.vector_store %arg4[%c0_24, %c0_25], %63 {strides = array<i32>} : memref<16x128xf32, #tpu.memory_space<vmem>>, vector<16x128xf32>,
    return
  }
  func.func @transform_0(%arg0: i32) -> (i32, i32) {
    %c0_i32 = arith.constant 0 : i32
    %c0_i32_0 = arith.constant 0 : i32
    return %arg0, %c0_i32 : i32, i32
  }
  func.func @transform_1(%arg0: i32) -> (i32, i32, i32) {
    %c0_i32 = arith.constant 0 : i32
    %c0_i32_0 = arith.constant 0 : i32
    %c0_i32_1 = arith.constant 0 : i32
    %c0_i32_2 = arith.constant 0 : i32
    return %c0_i32, %c0_i32_0, %c0_i32_1 : i32, i32, i32
  }
  func.func @transform_2(%arg0: i32) -> (i32, i32, i32) {
    %c0_i32 = arith.constant 0 : i32
    %c0_i32_0 = arith.constant 0 : i32
    %c0_i32_1 = arith.constant 0 : i32
    %c0_i32_2 = arith.constant 0 : i32
    return %c0_i32, %c0_i32_0, %c0_i32_1 : i32, i32, i32
  }
  func.func @transform_3(%arg0: i32) -> (i32, i32) {
    %c0_i32 = arith.constant 0 : i32
    %c0_i32_0 = arith.constant 0 : i32
    return %arg0, %c0_i32 : i32, i32
  }
}

</mosaic_0001>

<llo_original>
// kernel: tpu_custom_call.1
$region0: #{tpu_custom_call.1}
  #allocation0 [shape = 'u32[]', space=smem, size = 0x4, offset = 0x4, fixed_abs, tag = 'smem constant byte address 0x4 - core index']
  #allocation1 [shape = 'u32[144,128]{1,0:T(1,128)}', space=vmem, size = 0x12000, scoped, tag = 'internal scratch']
  %s0 = inlined_call_operand.hbm [shape: f32[16,128], index: 0, kind: input, shape index: {}]
  %s1 = inlined_call_operand.hbm [shape: f32[3,128,256], index: 1, kind: input, shape index: {}]
  %s2 = inlined_call_operand.hbm [shape: f32[3,2,128], index: 2, kind: input, shape index: {}]
  %s3 = inlined_call_operand.hbm [shape: f32[16,128], index: 3, kind: output, shape index: {}]
  %s4 = sld [smem:[#allocation0]]
  $region34: #{tpu_custom_call.1} parent=0
    _
  %s6 = ssub.s32 1, %s4
  %s7 = scalar_select 0, %s6, %s4
  $region1: #{tpu_custom_call.1} parent=0
    #allocation2 [shape = 'u8[8192]{0}', space=vmem, size = 0x2000, scoped, tag = 'input window, operand 0, single buffered']
    #allocation3 [shape = 's32[1]{0}', space=sflag, size = 0x4, scoped, tag = 'scoped memory for tpu_custom_call.1']
    #allocation4 [shape = 's32[1]{0}', space=sflag, size = 0x4, scoped, tag = 'scoped memory for tpu_custom_call.1']
    #allocation5 [shape = 'u8[393216]{0}', space=vmem, size = 0x60000, scoped, tag = 'input window, operand 1, single buffered']
    #allocation6 [shape = 's32[1]{0}', space=sflag, size = 0x4, scoped, tag = 'scoped memory for tpu_custom_call.1']
    #allocation7 [shape = 'u8[3072]{0}', space=vmem, size = 0xc00, scoped, tag = 'input window, operand 2, single buffered']
    #allocation8 [shape = 'u8[8192]{0}', space=vmem, size = 0x2000, scoped, tag = 'output window, operand 0, single buffered']
    %8 = vsyncpa [#allocation3], 0
    %9 = vsyncpa [#allocation6], 0
    %10 = vsyncpa [#allocation4], 0
    // Predicated region
    $region2: #{tpu_custom_call.1} parent=1 // pred_check
      _
    $region3: #{tpu_custom_call.1} parent=1 // pred_check_branch
      %12 = sbr.rel (0) target = $region5
    $region4: #{tpu_custom_call.1} parent=1 // pred_region
      %s14 = ssub.s32 256, 256
      %15 = vsyncadd [#allocation3], %s14
      %s16 = sshll.u32 [#allocation2], 4
      %s17 = int_to_ptr.vmem [resolvable:$true] %s16
      %22 = dma.hbm_to_vmem [thread:$0]  %s0, 256, %s17, [#allocation3], 128, 128, 8
    $region5: #{tpu_custom_call.1} parent=1 // pred_fallthru
      _
    // Predicated region
    $region6: #{tpu_custom_call.1} parent=1 // pred_check
      _
    $region7: #{tpu_custom_call.1} parent=1 // pred_check_branch
      %24 = sbr.rel (0) target = $region9
    $region8: #{tpu_custom_call.1} parent=1 // pred_region
      %s26 = ssub.s32 12288, 12288
      %27 = vsyncadd [#allocation6], %s26
      %s28 = sshll.u32 [#allocation5], 4
      %s29 = int_to_ptr.vmem [resolvable:$true] %s28
      %34 = dma.hbm_to_vmem [thread:$0]  %s1, 12288, %s29, [#allocation6], 256, 256, 16
    $region9: #{tpu_custom_call.1} parent=1 // pred_fallthru
      _
    // Predicated region
    $region10: #{tpu_custom_call.1} parent=1 // pred_check
      _
    $region11: #{tpu_custom_call.1} parent=1 // pred_check_branch
      %36 = sbr.rel (0) target = $region13
    $region12: #{tpu_custom_call.1} parent=1 // pred_region
      %s38 = ssub.s32 96, 96
      %39 = vsyncadd [#allocation6], %s38
      %s40 = sshll.u32 [#allocation7], 4
      %s41 = int_to_ptr.vmem [resolvable:$true] %s40
      %46 = dma.hbm_to_vmem [thread:$0]  %s2, 96, %s41, [#allocation6], 32, 32, 2
    $region13: #{tpu_custom_call.1} parent=1 // pred_fallthru
      _
    // Predicated region
    $region14: #{tpu_custom_call.1} parent=1 // pred_check
      _
    $region15: #{tpu_custom_call.1} parent=1 // pred_check_branch
      %48 = sbr.rel (0) target = $region17
    $region16: #{tpu_custom_call.1} parent=1 // pred_region
      %49 = dma.done [#allocation3], 256
    $region17: #{tpu_custom_call.1} parent=1 // pred_fallthru
      _
    // Predicated region
    $region18: #{tpu_custom_call.1} parent=1 // pred_check
      _
    $region19: #{tpu_custom_call.1} parent=1 // pred_check_branch
      %51 = sbr.rel (0) target = $region21
    $region20: #{tpu_custom_call.1} parent=1 // pred_region
      %52 = dma.done [#allocation6], 12288
    $region21: #{tpu_custom_call.1} parent=1 // pred_fallthru
      _
    // Predicated region
    $region22: #{tpu_custom_call.1} parent=1 // pred_check
      _
    $region23: #{tpu_custom_call.1} parent=1 // pred_check_branch
      %54 = sbr.rel (0) target = $region25
    $region24: #{tpu_custom_call.1} parent=1 // pred_region
      %55 = dma.done [#allocation6], 96
    $region25: #{tpu_custom_call.1} parent=1 // pred_fallthru
      _
    %v56 = vld [vmem:[#allocation2] sm:$0xff]
    %v57 = vld [vmem:[#allocation2 + $0x8] sm:$0xff]
    %v58 = vld [vmem:[#allocation5] sm:$0xff]
    %v59 = vld [vmem:[#allocation5 + $0x8] sm:$0xff]
    %v60 = vld [vmem:[#allocation5 + $0x10] sm:$0xff]
    %v61 = vld [vmem:[#allocation5 + $0x18] sm:$0xff]
    %v62 = vld [vmem:[#allocation5 + $0x20] sm:$0xff]
    %v63 = vld [vmem:[#allocation5 + $0x28] sm:$0xff]
    %v64 = vld [vmem:[#allocation5 + $0x30] sm:$0xff]
    %v65 = vld [vmem:[#allocation5 + $0x38] sm:$0xff]
    %v66 = vld [vmem:[#allocation5 + $0x40] sm:$0xff]
    %v67 = vld [vmem:[#allocation5 + $0x48] sm:$0xff]
    %v68 = vld [vmem:[#allocation5 + $0x50] sm:$0xff]
    %v69 = vld [vmem:[#allocation5 + $0x58] sm:$0xff]
    %v70 = vld [vmem:[#allocation5 + $0x60] sm:$0xff]
    %v71 = vld [vmem:[#allocation5 + $0x68] sm:$0xff]
    %v72 = vld [vmem:[#allocation5 + $0x70] sm:$0xff]
    %v73 = vld [vmem:[#allocation5 + $0x78] sm:$0xff]
    %v74 = vld [vmem:[#allocation5 + $0x80] sm:$0xff]
    %v75 = vld [vmem:[#allocation5 + $0x88] sm:$0xff]
    %v76 = vld [vmem:[#allocation5 + $0x90] sm:$0xff]
    %v77 = vld [vmem:[#allocation5 + $0x98] sm:$0xff]
    %v78 = vld [vmem:[#allocation5 + $0xa0] sm:$0xff]
    %v79 = vld [vmem:[#allocation5 + $0xa8] sm:$0xff]
    %v80 = vld [vmem:[#allocation5 + $0xb0] sm:$0xff]
    %v81 = vld [vmem:[#allocation5 + $0xb8] sm:$0xff]
    %v82 = vld [vmem:[#allocation5 + $0xc0] sm:$0xff]
    %v83 = vld [vmem:[#allocation5 + $0xc8] sm:$0xff]
    %v84 = vld [vmem:[#allocation5 + $0xd0] sm:$0xff]
    %v85 = vld [vmem:[#allocation5 + $0xd8] sm:$0xff]
    %v86 = vld [vmem:[#allocation5 + $0xe0] sm:$0xff]
    %v87 = vld [vmem:[#allocation5 + $0xe8] sm:$0xff]
    %v88 = vld [vmem:[#allocation5 + $0xf0] sm:$0xff]
    %v89 = vld [vmem:[#allocation5 + $0xf8] sm:$0xff]
    %v90 = vld [vmem:[#allocation7] sm:$0x3]
    %v91 = vlaneseq
    %v92 = vshrl.u32 %v91, 7
    %v93 = vsub.s32 0, %v92
    %v94 = vrot.slane %v90, %v93
    %95 = vmatprep.subr.mxu0 0.0
    %96 = vmatpush1.msra.mxu0 %v88
    %97 = vmatprep.subr.mxu0 0.0
    %98 = vmatpush1.msra.mxu0 %v86
    %99 = vmatprep.subr.mxu0 0.0
    %100 = vmatpush1.msra.mxu0 %v84
    %101 = vmatprep.subr.mxu0 0.0
    %102 = vmatpush1.msra.mxu0 %v82
    %103 = vmatprep.subr.mxu0 0.0
    %104 = vmatpush1.msra.mxu0 %v80
    %105 = vmatprep.subr.mxu0 0.0
    %106 = vmatpush1.msra.mxu0 %v78
    %107 = vmatprep.subr.mxu0 0.0
    %108 = vmatpush1.msra.mxu0 %v76
    %109 = vmatprep.subr.mxu0 0.0
    %110 = vmatpush1.msra.mxu0 %v74
    %111 = vmatprep.subr.mxu0 0.0
    %112 = vmatpush1.msra.mxu0 %v72
    %113 = vmatprep.subr.mxu0 0.0
    %114 = vmatpush1.msra.mxu0 %v70
    %115 = vmatprep.subr.mxu0 0.0
    %116 = vmatpush1.msra.mxu0 %v68
    %117 = vmatprep.subr.mxu0 0.0
    %118 = vmatpush1.msra.mxu0 %v66
    %119 = vmatprep.subr.mxu0 0.0
    %120 = vmatpush1.msra.mxu0 %v64
    %121 = vmatprep.subr.mxu0 0.0
    %122 = vmatpush1.msra.mxu0 %v62
    %123 = vmatprep.subr.mxu0 0.0
    %124 = vmatpush1.msra.mxu0 %v60
    %125 = vmatprep.subr.mxu0 0.0
    %126 = vmatpush1.msra.mxu0 %v58
    %127 = vmatprep.subr.mxu0 0.0
    %128 = vmatpush2.msra.mxu0 0.0
    %129 = vmatprep.subr.mxu0 0.0
    %130 = vmatpush2.msra.mxu0 0.0
    %131 = vmatprep.subr.mxu0 0.0
    %132 = vmatpush2.msra.mxu0 0.0
    %133 = vmatprep.subr.mxu0 0.0
    %134 = vmatpush2.msra.mxu0 0.0
    %135 = vmatprep.subr.mxu0 0.0
    %136 = vmatpush2.msra.mxu0 0.0
    %137 = vmatprep.subr.mxu0 0.0
    %138 = vmatpush2.msra.mxu0 0.0
    %139 = vmatprep.subr.mxu0 0.0
    %140 = vmatpush2.msra.mxu0 0.0
    %141 = vmatprep.subr.mxu0 0.0
    %142 = vmatpush2.msra.mxu0 0.0
    %143 = vmatprep.subr.mxu0 0.0
    %144 = vmatpush2.msra.mxu0 0.0
    %145 = vmatprep.subr.mxu0 0.0
    %146 = vmatpush2.msra.mxu0 0.0
    %147 = vmatprep.subr.mxu0 0.0
    %148 = vmatpush2.msra.mxu0 0.0
    %149 = vmatprep.subr.mxu0 0.0
    %150 = vmatpush2.msra.mxu0 0.0
    %151 = vmatprep.subr.mxu0 0.0
    %152 = vmatpush2.msra.mxu0 0.0
    %153 = vmatprep.subr.mxu0 0.0
    %154 = vmatpush2.msra.mxu0 0.0
    %155 = vmatprep.subr.mxu0 0.0
    %156 = vmatpush2.msra.mxu0 0.0
    %157 = vmatprep.subr.mxu0 0.0
    %158 = vmatpush2.msra.mxu0 0.0
    %159 = vmatprep.mubr.f32.mxu0 0.0
    %160 = vmatmul.mubr.f32.gmra.mxu0 %v56
    %v161 = vpop.f32.mrf.mxu0
    %v162 = vadd.f32 %v94, %v161
    %v163 = vpop.f32.mrf.mxu0
    %164 = vmatprep.mubr.f32.mxu0 0.0
    %165 = vmatmul.mubr.f32.gmra.mxu0 %v57
    %v166 = vpop.f32.mrf.mxu0
    %v167 = vadd.f32 %v94, %v166
    %v168 = vpop.f32.mrf.mxu0
    %169 = vdwg.mxu0
    %v170 = vmax.f32 %v162, 0.0
    %v171 = vmax.f32 %v167, 0.0
    %v172 = vlaneseq
    %v173 = vshrl.u32 %v172, 7
    %v174 = vsub.s32 1, %v173
    %v175 = vrot.slane %v90, %v174
    %176 = vmatprep.subr.mxu0 0.0
    %177 = vmatpush1.msra.mxu0 %v89
    %178 = vmatprep.subr.mxu0 0.0
    %179 = vmatpush1.msra.mxu0 %v87
    %180 = vmatprep.subr.mxu0 0.0
    %181 = vmatpush1.msra.mxu0 %v85
    %182 = vmatprep.subr.mxu0 0.0
    %183 = vmatpush1.msra.mxu0 %v83
    %184 = vmatprep.subr.mxu0 0.0
    %185 = vmatpush1.msra.mxu0 %v81
    %186 = vmatprep.subr.mxu0 0.0
    %187 = vmatpush1.msra.mxu0 %v79
    %188 = vmatprep.subr.mxu0 0.0
    %189 = vmatpush1.msra.mxu0 %v77
    %190 = vmatprep.subr.mxu0 0.0
    %191 = vmatpush1.msra.mxu0 %v75
    %192 = vmatprep.subr.mxu0 0.0
    %193 = vmatpush1.msra.mxu0 %v73
    %194 = vmatprep.subr.mxu0 0.0
    %195 = vmatpush1.msra.mxu0 %v71
    %196 = vmatprep.subr.mxu0 0.0
    %197 = vmatpush1.msra.mxu0 %v69
    %198 = vmatprep.subr.mxu0 0.0
    %199 = vmatpush1.msra.mxu0 %v67
    %200 = vmatprep.subr.mxu0 0.0
    %201 = vmatpush1.msra.mxu0 %v65
    %202 = vmatprep.subr.mxu0 0.0
    %203 = vmatpush1.msra.mxu0 %v63
    %204 = vmatprep.subr.mxu0 0.0
    %205 = vmatpush1.msra.mxu0 %v61
    %206 = vmatprep.subr.mxu0 0.0
    %207 = vmatpush1.msra.mxu0 %v59
    %208 = vmatprep.subr.mxu0 0.0
    %209 = vmatpush2.msra.mxu0 0.0
    %210 = vmatprep.subr.mxu0 0.0
    %211 = vmatpush2.msra.mxu0 0.0
    %212 = vmatprep.subr.mxu0 0.0
    %213 = vmatpush2.msra.mxu0 0.0
    %214 = vmatprep.subr.mxu0 0.0
    %215 = vmatpush2.msra.mxu0 0.0
    %216 = vmatprep.subr.mxu0 0.0
    %217 = vmatpush2.msra.mxu0 0.0
    %218 = vmatprep.subr.mxu0 0.0
    %219 = vmatpush2.msra.mxu0 0.0
    %220 = vmatprep.subr.mxu0 0.0
    %221 = vmatpush2.msra.mxu0 0.0
    %222 = vmatprep.subr.mxu0 0.0
    %223 = vmatpush2.msra.mxu0 0.0
    %224 = vmatprep.subr.mxu0 0.0
    %225 = vmatpush2.msra.mxu0 0.0
    %226 = vmatprep.subr.mxu0 0.0
    %227 = vmatpush2.msra.mxu0 0.0
    %228 = vmatprep.subr.mxu0 0.0
    %229 = vmatpush2.msra.mxu0 0.0
    %230 = vmatprep.subr.mxu0 0.0
    %231 = vmatpush2.msra.mxu0 0.0
    %232 = vmatprep.subr.mxu0 0.0
    %233 = vmatpush2.msra.mxu0 0.0
    %234 = vmatprep.subr.mxu0 0.0
    %235 = vmatpush2.msra.mxu0 0.0
    %236 = vmatprep.subr.mxu0 0.0
    %237 = vmatpush2.msra.mxu0 0.0
    %238 = vmatprep.subr.mxu0 0.0
    %239 = vmatpush2.msra.mxu0 0.0
    %240 = vmatprep.mubr.f32.mxu0 0.0
    %241 = vmatmul.mubr.f32.gmra.mxu0 %v170
    %v242 = vpop.f32.mrf.mxu0
    %v243 = vadd.f32 %v175, %v242
    %v244 = vpop.f32.mrf.mxu0
    %245 = vmatprep.mubr.f32.mxu0 0.0
    %246 = vmatmul.mubr.f32.gmra.mxu0 %v171
    %v247 = vpop.f32.mrf.mxu0
    %v248 = vadd.f32 %v175, %v247
    %v249 = vpop.f32.mrf.mxu0
    %250 = vdwg.mxu0
    %v251 = vadd.f32 %v243, %v56
    %v252 = vadd.f32 %v248, %v57
    %v253 = vmax.f32 %v251, 0.0
    %v254 = vmax.f32 %v252, 0.0
    %s255 = scalar_lea.vmem [#allocation5], 256
    %v256 = vld [vmem:[%s255] sm:$0xff]
    %v257 = vld [vmem:[%s255 + $0x8] sm:$0xff]
    %v258 = vld [vmem:[%s255 + $0x10] sm:$0xff]
    %v259 = vld [vmem:[%s255 + $0x18] sm:$0xff]
    %v260 = vld [vmem:[%s255 + $0x20] sm:$0xff]
    %v261 = vld [vmem:[%s255 + $0x28] sm:$0xff]
    %v262 = vld [vmem:[%s255 + $0x30] sm:$0xff]
    %v263 = vld [vmem:[%s255 + $0x38] sm:$0xff]
    %v264 = vld [vmem:[%s255 + $0x40] sm:$0xff]
    %v265 = vld [vmem:[%s255 + $0x48] sm:$0xff]
    %v266 = vld [vmem:[%s255 + $0x50] sm:$0xff]
    %v267 = vld [vmem:[%s255 + $0x58] sm:$0xff]
    %v268 = vld [vmem:[%s255 + $0x60] sm:$0xff]
    %v269 = vld [vmem:[%s255 + $0x68] sm:$0xff]
    %v270 = vld [vmem:[%s255 + $0x70] sm:$0xff]
    %v271 = vld [vmem:[%s255 + $0x78] sm:$0xff]
    %v272 = vld [vmem:[%s255 + $0x80] sm:$0xff]
    %v273 = vld [vmem:[%s255 + $0x88] sm:$0xff]
    %v274 = vld [vmem:[%s255 + $0x90] sm:$0xff]
    %v275 = vld [vmem:[%s255 + $0x98] sm:$0xff]
    %v276 = vld [vmem:[%s255 + $0xa0] sm:$0xff]
    %v277 = vld [vmem:[%s255 + $0xa8] sm:$0xff]
    %v278 = vld [vmem:[%s255 + $0xb0] sm:$0xff]
    %v279 = vld [vmem:[%s255 + $0xb8] sm:$0xff]
    %v280 = vld [vmem:[%s255 + $0xc0] sm:$0xff]
    %v281 = vld [vmem:[%s255 + $0xc8] sm:$0xff]
    %v282 = vld [vmem:[%s255 + $0xd0] sm:$0xff]
    %v283 = vld [vmem:[%s255 + $0xd8] sm:$0xff]
    %v284 = vld [vmem:[%s255 + $0xe0] sm:$0xff]
    %v285 = vld [vmem:[%s255 + $0xe8] sm:$0xff]
    %v286 = vld [vmem:[%s255 + $0xf0] sm:$0xff]
    %v287 = vld [vmem:[%s255 + $0xf8] sm:$0xff]
    %s288 = scalar_lea.vmem [#allocation7], 2
    %v289 = vld [vmem:[%s288] sm:$0x3]
    %v290 = vlaneseq
    %v291 = vshrl.u32 %v290, 7
    %v292 = vsub.s32 0, %v291
    %v293 = vrot.slane %v289, %v292
    %294 = vmatprep.subr.mxu0 0.0
    %295 = vmatpush1.msra.mxu0 %v286
    %296 = vmatprep.subr.mxu0 0.0
    %297 = vmatpush1.msra.mxu0 %v284
    %298 = vmatprep.subr.mxu0 0.0
    %299 = vmatpush1.msra.mxu0 %v282
    %300 = vmatprep.subr.mxu0 0.0
    %301 = vmatpush1.msra.mxu0 %v280
    %302 = vmatprep.subr.mxu0 0.0
    %303 = vmatpush1.msra.mxu0 %v278
    %304 = vmatprep.subr.mxu0 0.0
    %305 = vmatpush1.msra.mxu0 %v276
    %306 = vmatprep.subr.mxu0 0.0
    %307 = vmatpush1.msra.mxu0 %v274
    %308 = vmatprep.subr.mxu0 0.0
    %309 = vmatpush1.msra.mxu0 %v272
    %310 = vmatprep.subr.mxu0 0.0
    %311 = vmatpush1.msra.mxu0 %v270
    %312 = vmatprep.subr.mxu0 0.0
    %313 = vmatpush1.msra.mxu0 %v268
    %314 = vmatprep.subr.mxu0 0.0
    %315 = vmatpush1.msra.mxu0 %v266
    %316 = vmatprep.subr.mxu0 0.0
    %317 = vmatpush1.msra.mxu0 %v264
    %318 = vmatprep.subr.mxu0 0.0
    %319 = vmatpush1.msra.mxu0 %v262
    %320 = vmatprep.subr.mxu0 0.0
    %321 = vmatpush1.msra.mxu0 %v260
    %322 = vmatprep.subr.mxu0 0.0
    %323 = vmatpush1.msra.mxu0 %v258
    %324 = vmatprep.subr.mxu0 0.0
    %325 = vmatpush1.msra.mxu0 %v256
    %326 = vmatprep.subr.mxu0 0.0
    %327 = vmatpush2.msra.mxu0 0.0
    %328 = vmatprep.subr.mxu0 0.0
    %329 = vmatpush2.msra.mxu0 0.0
    %330 = vmatprep.subr.mxu0 0.0
    %331 = vmatpush2.msra.mxu0 0.0
    %332 = vmatprep.subr.mxu0 0.0
    %333 = vmatpush2.msra.mxu0 0.0
    %334 = vmatprep.subr.mxu0 0.0
    %335 = vmatpush2.msra.mxu0 0.0
    %336 = vmatprep.subr.mxu0 0.0
    %337 = vmatpush2.msra.mxu0 0.0
    %338 = vmatprep.subr.mxu0 0.0
    %339 = vmatpush2.msra.mxu0 0.0
    %340 = vmatprep.subr.mxu0 0.0
    %341 = vmatpush2.msra.mxu0 0.0
    %342 = vmatprep.subr.mxu0 0.0
    %343 = vmatpush2.msra.mxu0 0.0
    %344 = vmatprep.subr.mxu0 0.0
    %345 = vmatpush2.msra.mxu0 0.0
    %346 = vmatprep.subr.mxu0 0.0
    %347 = vmatpush2.msra.mxu0 0.0
    %348 = vmatprep.subr.mxu0 0.0
    %349 = vmatpush2.msra.mxu0 0.0
    %350 = vmatprep.subr.mxu0 0.0
    %351 = vmatpush2.msra.mxu0 0.0
    %352 = vmatprep.subr.mxu0 0.0
    %353 = vmatpush2.msra.mxu0 0.0
    %354 = vmatprep.subr.mxu0 0.0
    %355 = vmatpush2.msra.mxu0 0.0
    %356 = vmatprep.subr.mxu0 0.0
    %357 = vmatpush2.msra.mxu0 0.0
    %358 = vmatprep.mubr.f32.mxu0 0.0
    %359 = vmatmul.mubr.f32.gmra.mxu0 %v253
    %v360 = vpop.f32.mrf.mxu0
    %v361 = vadd.f32 %v293, %v360
    %v362 = vpop.f32.mrf.mxu0
    %363 = vmatprep.mubr.f32.mxu0 0.0
    %364 = vmatmul.mubr.f32.gmra.mxu0 %v254
    %v365 = vpop.f32.mrf.mxu0
    %v366 = vadd.f32 %v293, %v365
    %v367 = vpop.f32.mrf.mxu0
    %368 = vdwg.mxu0
    %v369 = vmax.f32 %v361, 0.0
    %v370 = vmax.f32 %v366, 0.0
    %v371 = vlaneseq
    %v372 = vshrl.u32 %v371, 7
    %v373 = vsub.s32 1, %v372
    %v374 = vrot.slane %v289, %v373
    %375 = vmatprep.subr.mxu0 0.0
    %376 = vmatpush1.msra.mxu0 %v287
    %377 = vmatprep.subr.mxu0 0.0
    %378 = vmatpush1.msra.mxu0 %v285
    %379 = vmatprep.subr.mxu0 0.0
    %380 = vmatpush1.msra.mxu0 %v283
    %381 = vmatprep.subr.mxu0 0.0
    %382 = vmatpush1.msra.mxu0 %v281
    %383 = vmatprep.subr.mxu0 0.0
    %384 = vmatpush1.msra.mxu0 %v279
    %385 = vmatprep.subr.mxu0 0.0
    %386 = vmatpush1.msra.mxu0 %v277
    %387 = vmatprep.subr.mxu0 0.0
    %388 = vmatpush1.msra.mxu0 %v275
    %389 = vmatprep.subr.mxu0 0.0
    %390 = vmatpush1.msra.mxu0 %v273
    %391 = vmatprep.subr.mxu0 0.0
    %392 = vmatpush1.msra.mxu0 %v271
    %393 = vmatprep.subr.mxu0 0.0
    %394 = vmatpush1.msra.mxu0 %v269
    %395 = vmatprep.subr.mxu0 0.0
    %396 = vmatpush1.msra.mxu0 %v267
    %397 = vmatprep.subr.mxu0 0.0
    %398 = vmatpush1.msra.mxu0 %v265
    %399 = vmatprep.subr.mxu0 0.0
    %400 = vmatpush1.msra.mxu0 %v263
    %401 = vmatprep.subr.mxu0 0.0
    %402 = vmatpush1.msra.mxu0 %v261
    %403 = vmatprep.subr.mxu0 0.0
    %404 = vmatpush1.msra.mxu0 %v259
    %405 = vmatprep.subr.mxu0 0.0
    %406 = vmatpush1.msra.mxu0 %v257
    %407 = vmatprep.subr.mxu0 0.0
    %408 = vmatpush2.msra.mxu0 0.0
    %409 = vmatprep.subr.mxu0 0.0
    %410 = vmatpush2.msra.mxu0 0.0
    %411 = vmatprep.subr.mxu0 0.0
    %412 = vmatpush2.msra.mxu0 0.0
    %413 = vmatprep.subr.mxu0 0.0
    %414 = vmatpush2.msra.mxu0 0.0
    %415 = vmatprep.subr.mxu0 0.0
    %416 = vmatpush2.msra.mxu0 0.0
    %417 = vmatprep.subr.mxu0 0.0
    %418 = vmatpush2.msra.mxu0 0.0
    %419 = vmatprep.subr.mxu0 0.0
    %420 = vmatpush2.msra.mxu0 0.0
    %421 = vmatprep.subr.mxu0 0.0
    %422 = vmatpush2.msra.mxu0 0.0
    %423 = vmatprep.subr.mxu0 0.0
    %424 = vmatpush2.msra.mxu0 0.0
    %425 = vmatprep.subr.mxu0 0.0
    %426 = vmatpush2.msra.mxu0 0.0
    %427 = vmatprep.subr.mxu0 0.0
    %428 = vmatpush2.msra.mxu0 0.0
    %429 = vmatprep.subr.mxu0 0.0
    %430 = vmatpush2.msra.mxu0 0.0
    %431 = vmatprep.subr.mxu0 0.0
    %432 = vmatpush2.msra.mxu0 0.0
    %433 = vmatprep.subr.mxu0 0.0
    %434 = vmatpush2.msra.mxu0 0.0
    %435 = vmatprep.subr.mxu0 0.0
    %436 = vmatpush2.msra.mxu0 0.0
    %437 = vmatprep.subr.mxu0 0.0
    %438 = vmatpush2.msra.mxu0 0.0
    %439 = vmatprep.mubr.f32.mxu0 0.0
    %440 = vmatmul.mubr.f32.gmra.mxu0 %v369
    %v441 = vpop.f32.mrf.mxu0
    %v442 = vadd.f32 %v374, %v441
    %v443 = vpop.f32.mrf.mxu0
    %444 = vmatprep.mubr.f32.mxu0 0.0
    %445 = vmatmul.mubr.f32.gmra.mxu0 %v370
    %v446 = vpop.f32.mrf.mxu0
    %v447 = vadd.f32 %v374, %v446
    %v448 = vpop.f32.mrf.mxu0
    %449 = vdwg.mxu0
    %v450 = vadd.f32 %v442, %v253
    %v451 = vadd.f32 %v447, %v254
    %v452 = vmax.f32 %v450, 0.0
    %v453 = vmax.f32 %v451, 0.0
    %s454 = scalar_lea.vmem [#allocation5], 512
    %v455 = vld [vmem:[%s454] sm:$0xff]
    %v456 = vld [vmem:[%s454 + $0x8] sm:$0xff]
    %v457 = vld [vmem:[%s454 + $0x10] sm:$0xff]
    %v458 = vld [vmem:[%s454 + $0x18] sm:$0xff]
    %v459 = vld [vmem:[%s454 + $0x20] sm:$0xff]
    %v460 = vld [vmem:[%s454 + $0x28] sm:$0xff]
    %v461 = vld [vmem:[%s454 + $0x30] sm:$0xff]
    %v462 = vld [vmem:[%s454 + $0x38] sm:$0xff]
    %v463 = vld [vmem:[%s454 + $0x40] sm:$0xff]
    %v464 = vld [vmem:[%s454 + $0x48] sm:$0xff]
    %v465 = vld [vmem:[%s454 + $0x50] sm:$0xff]
    %v466 = vld [vmem:[%s454 + $0x58] sm:$0xff]
    %v467 = vld [vmem:[%s454 + $0x60] sm:$0xff]
    %v468 = vld [vmem:[%s454 + $0x68] sm:$0xff]
    %v469 = vld [vmem:[%s454 + $0x70] sm:$0xff]
    %v470 = vld [vmem:[%s454 + $0x78] sm:$0xff]
    %v471 = vld [vmem:[%s454 + $0x80] sm:$0xff]
    %v472 = vld [vmem:[%s454 + $0x88] sm:$0xff]
    %v473 = vld [vmem:[%s454 + $0x90] sm:$0xff]
    %v474 = vld [vmem:[%s454 + $0x98] sm:$0xff]
    %v475 = vld [vmem:[%s454 + $0xa0] sm:$0xff]
    %v476 = vld [vmem:[%s454 + $0xa8] sm:$0xff]
    %v477 = vld [vmem:[%s454 + $0xb0] sm:$0xff]
    %v478 = vld [vmem:[%s454 + $0xb8] sm:$0xff]
    %v479 = vld [vmem:[%s454 + $0xc0] sm:$0xff]
    %v480 = vld [vmem:[%s454 + $0xc8] sm:$0xff]
    %v481 = vld [vmem:[%s454 + $0xd0] sm:$0xff]
    %v482 = vld [vmem:[%s454 + $0xd8] sm:$0xff]
    %v483 = vld [vmem:[%s454 + $0xe0] sm:$0xff]
    %v484 = vld [vmem:[%s454 + $0xe8] sm:$0xff]
    %v485 = vld [vmem:[%s454 + $0xf0] sm:$0xff]
    %v486 = vld [vmem:[%s454 + $0xf8] sm:$0xff]
    %s487 = scalar_lea.vmem [#allocation7], 4
    %v488 = vld [vmem:[%s487] sm:$0x3]
    %v489 = vlaneseq
    %v490 = vshrl.u32 %v489, 7
    %v491 = vsub.s32 0, %v490
    %v492 = vrot.slane %v488, %v491
    %493 = vmatprep.subr.mxu0 0.0
    %494 = vmatpush1.msra.mxu0 %v485
    %495 = vmatprep.subr.mxu0 0.0
    %496 = vmatpush1.msra.mxu0 %v483
    %497 = vmatprep.subr.mxu0 0.0
    %498 = vmatpush1.msra.mxu0 %v481
    %499 = vmatprep.subr.mxu0 0.0
    %500 = vmatpush1.msra.mxu0 %v479
    %501 = vmatprep.subr.mxu0 0.0
    %502 = vmatpush1.msra.mxu0 %v477
    %503 = vmatprep.subr.mxu0 0.0
    %504 = vmatpush1.msra.mxu0 %v475
    %505 = vmatprep.subr.mxu0 0.0
    %506 = vmatpush1.msra.mxu0 %v473
    %507 = vmatprep.subr.mxu0 0.0
    %508 = vmatpush1.msra.mxu0 %v471
    %509 = vmatprep.subr.mxu0 0.0
    %510 = vmatpush1.msra.mxu0 %v469
    %511 = vmatprep.subr.mxu0 0.0
    %512 = vmatpush1.msra.mxu0 %v467
    %513 = vmatprep.subr.mxu0 0.0
    %514 = vmatpush1.msra.mxu0 %v465
    %515 = vmatprep.subr.mxu0 0.0
    %516 = vmatpush1.msra.mxu0 %v463
    %517 = vmatprep.subr.mxu0 0.0
    %518 = vmatpush1.msra.mxu0 %v461
    %519 = vmatprep.subr.mxu0 0.0
    %520 = vmatpush1.msra.mxu0 %v459
    %521 = vmatprep.subr.mxu0 0.0
    %522 = vmatpush1.msra.mxu0 %v457
    %523 = vmatprep.subr.mxu0 0.0
    %524 = vmatpush1.msra.mxu0 %v455
    %525 = vmatprep.subr.mxu0 0.0
    %526 = vmatpush2.msra.mxu0 0.0
    %527 = vmatprep.subr.mxu0 0.0
    %528 = vmatpush2.msra.mxu0 0.0
    %529 = vmatprep.subr.mxu0 0.0
    %530 = vmatpush2.msra.mxu0 0.0
    %531 = vmatprep.subr.mxu0 0.0
    %532 = vmatpush2.msra.mxu0 0.0
    %533 = vmatprep.subr.mxu0 0.0
    %534 = vmatpush2.msra.mxu0 0.0
    %535 = vmatprep.subr.mxu0 0.0
    %536 = vmatpush2.msra.mxu0 0.0
    %537 = vmatprep.subr.mxu0 0.0
    %538 = vmatpush2.msra.mxu0 0.0
    %539 = vmatprep.subr.mxu0 0.0
    %540 = vmatpush2.msra.mxu0 0.0
    %541 = vmatprep.subr.mxu0 0.0
    %542 = vmatpush2.msra.mxu0 0.0
    %543 = vmatprep.subr.mxu0 0.0
    %544 = vmatpush2.msra.mxu0 0.0
    %545 = vmatprep.subr.mxu0 0.0
    %546 = vmatpush2.msra.mxu0 0.0
    %547 = vmatprep.subr.mxu0 0.0
    %548 = vmatpush2.msra.mxu0 0.0
    %549 = vmatprep.subr.mxu0 0.0
    %550 = vmatpush2.msra.mxu0 0.0
    %551 = vmatprep.subr.mxu0 0.0
    %552 = vmatpush2.msra.mxu0 0.0
    %553 = vmatprep.subr.mxu0 0.0
    %554 = vmatpush2.msra.mxu0 0.0
    %555 = vmatprep.subr.mxu0 0.0
    %556 = vmatpush2.msra.mxu0 0.0
    %557 = vmatprep.mubr.f32.mxu0 0.0
    %558 = vmatmul.mubr.f32.gmra.mxu0 %v452
    %v559 = vpop.f32.mrf.mxu0
    %v560 = vadd.f32 %v492, %v559
    %v561 = vpop.f32.mrf.mxu0
    %562 = vmatprep.mubr.f32.mxu0 0.0
    %563 = vmatmul.mubr.f32.gmra.mxu0 %v453
    %v564 = vpop.f32.mrf.mxu0
    %v565 = vadd.f32 %v492, %v564
    %v566 = vpop.f32.mrf.mxu0
    %567 = vdwg.mxu0
    %v568 = vmax.f32 %v560, 0.0
    %v569 = vmax.f32 %v565, 0.0
    %v570 = vlaneseq
    %v571 = vshrl.u32 %v570, 7
    %v572 = vsub.s32 1, %v571
    %v573 = vrot.slane %v488, %v572
    %574 = vmatprep.subr.mxu0 0.0
    %575 = vmatpush1.msra.mxu0 %v486
    %576 = vmatprep.subr.mxu0 0.0
    %577 = vmatpush1.msra.mxu0 %v484
    %578 = vmatprep.subr.mxu0 0.0
    %579 = vmatpush1.msra.mxu0 %v482
    %580 = vmatprep.subr.mxu0 0.0
    %581 = vmatpush1.msra.mxu0 %v480
    %582 = vmatprep.subr.mxu0 0.0
    %583 = vmatpush1.msra.mxu0 %v478
    %584 = vmatprep.subr.mxu0 0.0
    %585 = vmatpush1.msra.mxu0 %v476
    %586 = vmatprep.subr.mxu0 0.0
    %587 = vmatpush1.msra.mxu0 %v474
    %588 = vmatprep.subr.mxu0 0.0
    %589 = vmatpush1.msra.mxu0 %v472
    %590 = vmatprep.subr.mxu0 0.0
    %591 = vmatpush1.msra.mxu0 %v470
    %592 = vmatprep.subr.mxu0 0.0
    %593 = vmatpush1.msra.mxu0 %v468
    %594 = vmatprep.subr.mxu0 0.0
    %595 = vmatpush1.msra.mxu0 %v466
    %596 = vmatprep.subr.mxu0 0.0
    %597 = vmatpush1.msra.mxu0 %v464
    %598 = vmatprep.subr.mxu0 0.0
    %599 = vmatpush1.msra.mxu0 %v462
    %600 = vmatprep.subr.mxu0 0.0
    %601 = vmatpush1.msra.mxu0 %v460
    %602 = vmatprep.subr.mxu0 0.0
    %603 = vmatpush1.msra.mxu0 %v458
    %604 = vmatprep.subr.mxu0 0.0
    %605 = vmatpush1.msra.mxu0 %v456
    %606 = vmatprep.subr.mxu0 0.0
    %607 = vmatpush2.msra.mxu0 0.0
    %608 = vmatprep.subr.mxu0 0.0
    %609 = vmatpush2.msra.mxu0 0.0
    %610 = vmatprep.subr.mxu0 0.0
    %611 = vmatpush2.msra.mxu0 0.0
    %612 = vmatprep.subr.mxu0 0.0
    %613 = vmatpush2.msra.mxu0 0.0
    %614 = vmatprep.subr.mxu0 0.0
    %615 = vmatpush2.msra.mxu0 0.0
    %616 = vmatprep.subr.mxu0 0.0
    %617 = vmatpush2.msra.mxu0 0.0
    %618 = vmatprep.subr.mxu0 0.0
    %619 = vmatpush2.msra.mxu0 0.0
    %620 = vmatprep.subr.mxu0 0.0
    %621 = vmatpush2.msra.mxu0 0.0
    %622 = vmatprep.subr.mxu0 0.0
    %623 = vmatpush2.msra.mxu0 0.0
    %624 = vmatprep.subr.mxu0 0.0
    %625 = vmatpush2.msra.mxu0 0.0
    %626 = vmatprep.subr.mxu0 0.0
    %627 = vmatpush2.msra.mxu0 0.0
    %628 = vmatprep.subr.mxu0 0.0
    %629 = vmatpush2.msra.mxu0 0.0
    %630 = vmatprep.subr.mxu0 0.0
    %631 = vmatpush2.msra.mxu0 0.0
    %632 = vmatprep.subr.mxu0 0.0
    %633 = vmatpush2.msra.mxu0 0.0
    %634 = vmatprep.subr.mxu0 0.0
    %635 = vmatpush2.msra.mxu0 0.0
    %636 = vmatprep.subr.mxu0 0.0
    %637 = vmatpush2.msra.mxu0 0.0
    %638 = vmatprep.mubr.f32.mxu0 0.0
    %639 = vmatmul.mubr.f32.gmra.mxu0 %v568
    %v640 = vpop.f32.mrf.mxu0
    %v641 = vadd.f32 %v573, %v640
    %v642 = vpop.f32.mrf.mxu0
    %643 = vmatprep.mubr.f32.mxu0 0.0
    %644 = vmatmul.mubr.f32.gmra.mxu0 %v569
    %v645 = vpop.f32.mrf.mxu0
    %v646 = vadd.f32 %v573, %v645
    %v647 = vpop.f32.mrf.mxu0
    %648 = vdwg.mxu0
    %v649 = vadd.f32 %v641, %v452
    %v650 = vadd.f32 %v646, %v453
    %v651 = vmax.f32 %v649, 0.0
    %v652 = vmax.f32 %v650, 0.0
    %653 = vst [vmem:[#allocation8] sm:$0xff] %v651
    %654 = vst [vmem:[#allocation8 + $0x8] sm:$0xff] %v652
    // Predicated region
    $region26: #{tpu_custom_call.1} parent=1 // pred_check
      _
    $region27: #{tpu_custom_call.1} parent=1 // pred_check_branch
      %656 = sbr.rel (0) target = $region29
    $region28: #{tpu_custom_call.1} parent=1 // pred_region
      %s658 = ssub.s32 256, 256
      %659 = vsyncadd [#allocation4], %s658
      %s660 = sshll.u32 [#allocation8], 4
      %s661 = int_to_ptr.vmem [resolvable:$true] %s660
      %666 = dma.vmem_to_hbm [thread:$0]  %s661, 256, %s3, [#allocation4], 128, 128, 8
    $region29: #{tpu_custom_call.1} parent=1 // pred_fallthru
      _
    // Predicated region
    $region30: #{tpu_custom_call.1} parent=1 // pred_check
      _
    $region31: #{tpu_custom_call.1} parent=1 // pred_check_branch
      %668 = sbr.rel (0) target = $region33
    $region32: #{tpu_custom_call.1} parent=1 // pred_region
      %669 = dma.done [#allocation4], 256
    $region33: #{tpu_custom_call.1} parent=1 // pred_fallthru
      _
    %670 = vsyncpa [#allocation3], 1
    %671 = vsyncpa [#allocation6], 1
    %672 = vsyncpa [#allocation4], 1

</llo_original>
